<compile_context>
chip_gen: v7x
topology: tpu7x:2x2x1
jax: 0.10.0
libtpu: 0.0.40
codegen_flags: <defaults>
</compile_context>

<pallas_src>
import functools
import math
import numpy as np

import jax
import jax.numpy as jnp
from jax import lax
from jax.experimental import pallas as pl
from jax.experimental.pallas import tpu as pltpu


_GEOMETRIC_OPS = ('ShearX', 'ShearY', 'TranslateX', 'TranslateY', 'Rotate')
_SIGNLESS_OPS = ('Identity', 'Shear', 'ShearX', 'ShearY', 'Translate',
                 'TranslateX', 'TranslateY', 'Rotate')

_MIB = 1024 * 1024


# ---------------------------------------------------------------------------
# Generation-aware VMEM budgeting
# ---------------------------------------------------------------------------
@functools.lru_cache(maxsize=None)
def _vmem_budget():
    """Returns (per-step working-set budget, vmem_limit_bytes) for this chip."""
    try:
        cap = int(pltpu.get_tpu_info().vmem_capacity_bytes)
    except Exception:
        cap = 64 * _MIB                       # conservative (v7x-sized) fallback
    if cap <= 0:
        cap = 64 * _MIB
    vmem_limit = min((cap * 3) // 4, 96 * _MIB)   # ~48 MiB on v7x, 96 MiB on v5e/v6e
    budget = vmem_limit // 3
    return budget, vmem_limit


# ---------------------------------------------------------------------------
# In-kernel u8 <-> f32 conversion helpers (well-trodden convert paths)
# ---------------------------------------------------------------------------
def _u8_to_f32(x):
    return x.astype(jnp.int32).astype(jnp.float32)


def _f32_to_u8(x, do_round=True):
    # TODO(synk): jnp.round is round-half-to-even; PIL/torch uint8 conversion
    # conventions can differ by +/-1 LSB.
    if do_round:
        x = jnp.round(x)
    return jnp.clip(x, 0.0, 255.0).astype(jnp.int32).astype(jnp.uint8)


# ---------------------------------------------------------------------------
# Geometric kernel: nearest-neighbour inverse-affine resample, zero fill.
#   out[c, y, x] = img[c, sy(y,x), sx(y,x)]  if in bounds else 0
# implemented per output-row tile as:
#   V   = img2d (C*H, W) @ csel (W, P)        # column gather (MXU, lane-dense P)
#   out = sum_r rsel (H, P) * V               # row select (VPU + sublane reduce)
# where P = TR*W output pixels per grid step (lane axis, multiple of 128).
# TODO(synk): exact PIL nearest rounding / border conventions can differ from
# this floor-of-pixel-center approximation by up to half a pixel.
# ---------------------------------------------------------------------------
def _make_geometric_kernel(C, H, W, TR):
    P = TR * W
    split_ok = (H % 8 == 0)

    def kernel(params_ref, img_ref, out_ref):
        a = params_ref[0]
        b = params_ref[1]
        c = params_ref[2]
        d = params_ref[3]
        e = params_ref[4]
        f = params_ref[5]
        y0 = (pl.program_id(1) * TR).astype(jnp.float32)

        im = _u8_to_f32(img_ref[0])                            # (C*H, W)

        # Inverse-mapped source coordinates computed once on a (1, P) row
        # (negligible VPU work), then broadcast into the one-hot compares.
        p_f = lax.broadcasted_iota(jnp.float32, (1, P), 1)
        y_l = jnp.floor(p_f / float(W))                        # local output row
        xc = p_f - y_l * float(W) + 0.5                        # output x + 0.5
        yc = y_l + (y0 + 0.5)                                  # output y + 0.5
        sx = jnp.floor(a * xc + b * yc + c).astype(jnp.int32)  # (1, P)
        sy = jnp.floor(d * xc + e * yc + f).astype(jnp.int32)  # (1, P)

        # Column one-hot selector (W, P): csel[q, p] = (q == sx[p])  (int compare)
        q_i = lax.broadcasted_iota(jnp.int32, (W, P), 0)
        csel = jnp.where(q_i == sx, 1.0, 0.0)                  # f32

        # Column gather for all channels at once (MXU); exact (one-hot).
        v = jnp.dot(im, csel, preferred_element_type=jnp.float32)   # (C*H, P)

        # Row one-hot selector (H, P): rsel[r, p] = (r == sy[p])
        r_i = lax.broadcasted_iota(jnp.int32, (H, P), 0)
        rsel = jnp.where(r_i == sy, 1.0, 0.0)                  # (H, P)

        if split_ok:
            v3 = v.reshape(C, H, P)
            out = jnp.sum(rsel[None, :, :] * v3, axis=1)       # (C, P)
        else:
            chans = [jnp.sum(rsel * v[ch * H:(ch + 1) * H], axis=0, keepdims=True)
                     for ch in range(C)]
            out = jnp.concatenate(chans, axis=0)

        out_ref[0] = _f32_to_u8(out, do_round=False)           # exact ints already

    return kernel


def _choose_row_tile(H, W, C, budget_bytes):
    """Largest row-tile TR dividing H with lane-dense P=TR*W fitting the budget."""
    candidates = [tr for tr in range(1, H + 1)
                  if H % tr == 0 and ((tr * W) % 128 == 0 or tr == H)]

    def est(tr):
        p = tr * W
        io = 2 * C * H * W + 2 * C * p       # double-buffered u8 in/out blocks
        sel = 8 * p * (W + H)                # selector tensors + iotas (f32/i32)
        gat = 8 * C * H * p                  # gathered values + product temp
        return io + sel + gat + (1 << 20)    # 1 MiB slack

    fits = [tr for tr in candidates if est(tr) <= budget_bytes]
    return max(fits) if fits else min(candidates)


@functools.lru_cache(maxsize=None)
def _build_geometric_fn(B, C, H, W):
    budget, vmem_limit = _vmem_budget()
    TR = _choose_row_tile(H, W, C, budget)
    P = TR * W
    T = H // TR
    kernel = _make_geometric_kernel(C, H, W, TR)

    pc = pl.pallas_call(
        kernel,
        out_shape=jax.ShapeDtypeStruct((B, C, H * W), jnp.uint8),
        grid=(B, T),
        in_specs=[
            pl.BlockSpec(memory_space=pltpu.MemorySpace.SMEM),        # params
            pl.BlockSpec((1, C * H, W), lambda bi, ti: (bi, 0, 0)),   # image (u8)
        ],
        out_specs=pl.BlockSpec((1, C, P), lambda bi, ti: (bi, 0, ti)),
        compiler_params=pltpu.CompilerParams(
            dimension_semantics=("parallel", "parallel"),
            vmem_limit_bytes=int(vmem_limit)),
    )

    def run(img_u8, params):
        x = img_u8.reshape(B, C * H, W)       # free reshape, uint8 end-to-end
        y = pc(params, x)                     # (B, C, HW) uint8
        return y.reshape(B, C, H, W)

    return jax.jit(run)


# ---------------------------------------------------------------------------
# Photometric kernels: elementwise / per-image-reduction / 3x3-smooth ops.
# Non-Sharpness ops run on dense (BT, C, HW//128, 128) blocks; Sharpness keeps
# (BT, C, H, W) for its neighbourhood rolls.
# ---------------------------------------------------------------------------
def _make_photometric_kernel(op_name, H, W):
    def kernel(params_ref, img_ref, out_ref):
        mag = params_ref[6]
        x = _u8_to_f32(img_ref[...])            # (BT, C, rows, cols)

        if op_name == 'Identity':
            out = x
        elif op_name == 'Brightness':
            out = x * mag
        elif op_name == 'Gamma':
            xn = x * (1.0 / 255.0)
            out = 255.0 * jnp.where(
                xn <= 0.0, 0.0,
                jnp.exp(mag * jnp.log(jnp.maximum(xn, 1e-12))))
        elif op_name == 'Contrast':
            # TODO(synk): PIL computes the mean on the uint8 "L" image; this is
            # the float approximation (off by <1 grey level).
            l = 0.299 * x[:, 0] + 0.587 * x[:, 1] + 0.114 * x[:, 2]
            mean = jnp.round(jnp.mean(l, axis=(1, 2), keepdims=True))  # per image
            mean = mean[:, None]                                       # (BT,1,1,1)
            out = mean + mag * (x - mean)
        elif op_name == 'Saturation':
            l = (0.299 * x[:, 0] + 0.587 * x[:, 1] + 0.114 * x[:, 2])[:, None]
            out = l + mag * (x - l)
        elif op_name == 'Sharpness':
            # PIL SMOOTH kernel [[1,1,1],[1,5,1],[1,1,1]]/13, separable 3x3 sum
            # (4 rolls).  Border pixels keep their original value, so the roll
            # wrap-around never leaks into the result.
            row = (x + pltpu.roll(x, shift=1, axis=3)
                   + pltpu.roll(x, shift=W - 1, axis=3))
            s3 = (row + pltpu.roll(row, shift=1, axis=2)
                  + pltpu.roll(row, shift=H - 1, axis=2))
            blur = (s3 + 4.0 * x) * (1.0 / 13.0)
            yy = lax.broadcasted_iota(jnp.int32, (1, 1, H, W), 2)
            xx = lax.broadcasted_iota(jnp.int32, (1, 1, H, W), 3)
            border = (yy == 0) | (yy == H - 1) | (xx == 0) | (xx == W - 1)
            degenerate = jnp.where(border, x, blur)
            out = degenerate + mag * (x - degenerate)
        elif op_name == 'Hue':
            # TODO(synk): PIL quantizes HSV to uint8 before shifting hue; this
            # uses float HSV (continuous approximation).
            inv255 = 1.0 / 255.0
            r = x[:, 0] * inv255
            g = x[:, 1] * inv255
            b = x[:, 2] * inv255
            maxc = jnp.maximum(jnp.maximum(r, g), b)
            minc = jnp.minimum(jnp.minimum(r, g), b)
            v = maxc
            delta = maxc - minc
            # approx reciprocal only scales saturation; the sector decision
            # below uses an exact divide so the sextant never flips.
            s = delta * pl.reciprocal(jnp.maximum(maxc, 1e-6), approx=True)
            inv_d = 1.0 / jnp.where(delta > 0.0, delta, 1.0)
            rc = (maxc - r) * inv_d
            gc = (maxc - g) * inv_d
            bc = (maxc - b) * inv_d
            h = jnp.where(r == maxc, bc - gc,
                          jnp.where(g == maxc, 2.0 + rc - bc,
                                    4.0 + gc - rc)) * (1.0 / 6.0)
            h = h - jnp.floor(h)
            h = jnp.where(delta > 0.0, h, 0.0)
            h = h + mag
            h = h - jnp.floor(h)
            h6 = h * 6.0
            hi = jnp.clip(jnp.floor(h6), 0.0, 5.0).astype(jnp.int32)
            frac = h6 - jnp.floor(h6)
            pch = v * (1.0 - s)
            qch = v * (1.0 - s * frac)
            tch = v * (1.0 - s * (1.0 - frac))
            # sector masks computed once and reused across the three channels
            m0 = hi == 0
            m1 = hi == 1
            m2 = hi == 2
            m3 = hi == 3
            m4 = hi == 4
            r2 = jnp.where(m1, qch, jnp.where(m2 | m3, pch,
                                              jnp.where(m4, tch, v)))
            g2 = jnp.where(m0, tch, jnp.where(m1 | m2, v,
                                              jnp.where(m3, qch, pch)))
            b2 = jnp.where(m0 | m1, pch, jnp.where(m2, tch,
                                                   jnp.where(m3 | m4, v, qch)))
            out = jnp.stack([r2, g2, b2], axis=1) * 255.0
        else:
            raise ValueError('unsupported op ' + op_name)

        out_ref[...] = _f32_to_u8(out)

    return kernel


def _choose_batch_tile(B, per_image_bytes, budget_bytes):
    bt = 1
    for cand in range(1, B + 1):
        if B % cand == 0 and cand * per_image_bytes <= budget_bytes:
            bt = cand
    return bt


@functools.lru_cache(maxsize=None)
def _build_photometric_fn(op_name, B, C, H, W):
    HW = H * W
    budget, vmem_limit = _vmem_budget()

    if op_name == 'Sharpness' or HW % 128 != 0:
        # Sharpness needs the 2D spatial structure for its 3x3 smooth.
        # TODO(synk): for W < 128, packing several batch images along the lane
        # axis would make the Sharpness rolls fully lane-dense.
        rows, cols = H, W
    else:
        # Lane-dense channel planes: every vreg fully used on the lane axis.
        rows, cols = HW // 128, 128

    per_image = C * HW * (4 + 48)     # u8 in/out double-buffered + ~12 f32 temps
    BT = _choose_batch_tile(B, per_image, budget)
    kernel = _make_photometric_kernel(op_name, H, W)

    pc = pl.pallas_call(
        kernel,
        out_shape=jax.ShapeDtypeStruct((B, C, rows, cols), jnp.uint8),
        grid=(B // BT,),
        in_specs=[
            pl.BlockSpec(memory_space=pltpu.MemorySpace.SMEM),
            pl.BlockSpec((BT, C, rows, cols), lambda bi: (bi, 0, 0, 0)),
        ],
        out_specs=pl.BlockSpec((BT, C, rows, cols), lambda bi: (bi, 0, 0, 0)),
        compiler_params=pltpu.CompilerParams(
            dimension_semantics=("parallel",),
            vmem_limit_bytes=int(vmem_limit)),
    )

    def run(img_u8, params):
        x = img_u8.reshape(B, C, rows, cols)   # free reshape, uint8 end-to-end
        y = pc(params, x)
        return y.reshape(B, C, H, W)

    return jax.jit(run)


# ---------------------------------------------------------------------------
# Wrapper glue: affine coefficients + dispatch
# ---------------------------------------------------------------------------
def _affine_coeffs(op_name, magnitude, H, W, translate_mode='abs'):
    if op_name == 'ShearX':
        m = math.radians(magnitude)
        return (1.0, m, 0.0, 0.0, 1.0, 0.0)
    if op_name == 'ShearY':
        m = math.radians(magnitude)
        return (1.0, 0.0, 0.0, m, 1.0, 0.0)
    if op_name == 'TranslateX':
        m = -float(magnitude)                 # translate_x_impl negates first
        if translate_mode == 'rel':
            m = float(int(m * W))
        return (1.0, 0.0, m, 0.0, 1.0, 0.0)
    if op_name == 'TranslateY':
        m = float(magnitude)
        if translate_mode == 'rel':
            m = float(int(m * H))
        return (1.0, 0.0, 0.0, 0.0, 1.0, m)
    if op_name == 'Rotate':
        # Mirrors PIL Image.rotate(angle) (rotation about the image center).
        ang = -math.radians(magnitude)
        ca, sa = math.cos(ang), math.sin(ang)
        cx, cy = W / 2.0, H / 2.0
        a, b, d, e = ca, sa, -sa, ca
        c = a * (-cx) + b * (-cy) + cx
        f = d * (-cx) + e * (-cy) + cy
        return (a, b, c, d, e, f)
    return (1.0, 0.0, 0.0, 0.0, 1.0, 0.0)


def apply_op_pallas(img_u8, op_name, magnitude, translate_mode='abs'):
    """Apply one augmentation op to a uint8 (3,H,W) or (B,3,H,W) image."""
    squeeze = (img_u8.ndim == 3)
    imgb = img_u8[None] if squeeze else img_u8
    if imgb.dtype != jnp.uint8:
        imgb = imgb.astype(jnp.uint8)
    B, C, H, W = imgb.shape
    assert C == 3, 'expected RGB images with 3 channels'  # TODO(synk): no 1-chan

    if op_name in _GEOMETRIC_OPS:
        a, b, c, d, e, f = _affine_coeffs(op_name, magnitude, H, W,
                                          translate_mode)
        params = jnp.array([a, b, c, d, e, f, float(magnitude), 0.0],
                           jnp.float32)
        out = _build_geometric_fn(B, C, H, W)(imgb, params)
    else:
        params = jnp.array([1.0, 0.0, 0.0, 0.0, 1.0, 0.0, float(magnitude),
                            0.0], jnp.float32)
        out = _build_photometric_fn(op_name, B, C, H, W)(imgb, params)

    return out[0] if squeeze else out


# ---------------------------------------------------------------------------
# Module equivalent
# ---------------------------------------------------------------------------
class AugmentT3POPallas:
    """Pallas/JAX equivalent of Augment_T3PO (random single-op branch)."""

    def __init__(self, num_magnitude_bins=32, augmentation_space_name='default',
                 mode='return_transforms', is_test=False, fast_test=False,
                 translate_mode='abs'):
        self.num_magnitude_bins = num_magnitude_bins
        self.mode = mode
        self.is_test = is_test
        self.fast_test = fast_test
        self.translate_mode = translate_mode
        if augmentation_space_name == 'default':
            self.augmentation_space = self._default_augmentation_space()
        elif augmentation_space_name == 'wide':
            self.augmentation_space = self._wide_augmentation_space()
        else:
            raise ValueError('not a valid augmentation space')
        self.n_augs = len(self.augmentation_space)

    def _default_augmentation_space(self):
        nb = self.num_magnitude_bins
        max_translate = 0.25 if self.translate_mode == 'rel' else 10.0
        shear_angle = math.degrees(0.3)
        return {
            'Identity': (np.zeros(nb, np.float32), 0.0),
            'ShearX': (np.linspace(-shear_angle, shear_angle, nb), 0.0),
            'ShearY': (np.linspace(-shear_angle, shear_angle, nb), 0.0),
            'TranslateX': (np.linspace(-max_translate, max_translate, nb), 0.0),
            'TranslateY': (np.linspace(-max_translate, max_translate, nb), 0.0),
            'Rotate': (np.linspace(-30.0, 30.0, nb), 0.0),
            'Brightness': (np.linspace(0.5, 2.0, nb), 1.0),
            'Contrast': (np.linspace(0.5, 2.0, nb), 1.0),
            'Saturation': (np.linspace(0.5, 2.0, nb), 1.0),
            'Hue': (np.linspace(-0.05, 0.05, nb), 0.0),
            'Gamma': (np.linspace(0.5, 2.0, nb), 1.0),
            'Sharpness': (np.linspace(0.5, 2.0, nb), 1.0),
        }

    def _wide_augmentation_space(self):
        nb = self.num_magnitude_bins
        max_translate = 0.5 if self.translate_mode == 'rel' else 32.0
        shear_angle = math.degrees(0.99)
        return {
            'Identity': (np.zeros(nb, np.float32), 0.0),
            'ShearX': (np.linspace(-shear_angle, shear_angle, nb), 0.0),
            'ShearY': (np.linspace(-shear_angle, shear_angle, nb), 0.0),
            'TranslateX': (np.linspace(-max_translate, max_translate, nb), 0.0),
            'TranslateY': (np.linspace(-max_translate, max_translate, nb), 0.0),
            'Rotate': (np.linspace(-135.0, 135.0, nb), 0.0),
            'Brightness': (np.linspace(0.1, 2.5, nb), 1.0),
            'Contrast': (np.linspace(0.1, 2.5, nb), 1.0),
            'Saturation': (np.linspace(0.1, 2.5, nb), 1.0),
            'Hue': (np.linspace(-0.1, 0.1, nb), 0.0),
            'Gamma': (np.linspace(0.1, 2.5, nb), 1.0),
            'Sharpness': (np.linspace(0.1, 2.5, nb), 1.0),
        }

    def forward(self, img, rng=None):
        """img: uint8 (3,H,W) or (B,3,H,W); rng: int seed / np.random.Generator.

        Op and magnitude are sampled on the HOST with numpy (no device sync,
        no per-magnitude recompiles - magnitudes go through an SMEM params arg).
        """
        if rng is None:
            rng = np.random.default_rng()
        elif isinstance(rng, (int, np.integer)):
            rng = np.random.default_rng(int(rng))

        aug_keys = list(self.augmentation_space.keys())
        op_index = int(rng.integers(0, len(aug_keys)))
        op_name = aug_keys[op_index]
        magnitudes, _neutral = self.augmentation_space[op_name]
        op_magnitude_index = int(rng.integers(0, len(magnitudes)))
        magnitude = float(magnitudes[op_magnitude_index])
        op_sign = 0 if op_name in _SIGNLESS_OPS else 1

        out = apply_op_pallas(img, op_name, magnitude, self.translate_mode)

        if self.mode == 'return_transforms':
            return out, op_index
        elif self.mode == 'return_signs':
            return out, op_sign
        return out, op_index, op_magnitude_index, op_sign

    __call__ = forward


# ---------------------------------------------------------------------------
# Main
# ---------------------------------------------------------------------------
if __name__ == "__main__":
    key = jax.random.PRNGKey(0)
    k_img, k_img2 = jax.random.split(key)
    B, H, W = 2, 16, 16
    img = jax.random.randint(k_img, (B, 3, H, W), 0, 256,
                             dtype=jnp.int32).astype(jnp.uint8)

    aug = AugmentT3POPallas(num_magnitude_bins=32,
                            augmentation_space_name='default',
                            mode='return_transforms')
    out_img, op_index = aug.forward(img, rng=0)
    out_img = jax.block_until_ready(out_img)
    assert out_img.shape == (B, 3, H, W)
    assert out_img.dtype == jnp.uint8

    # Exactness self-checks (Identity photometric path, identity affine path).
    ident = jax.block_until_ready(apply_op_pallas(img, 'Identity', 0.0))
    assert np.array_equal(np.asarray(ident), np.asarray(img))
    tr0 = jax.block_until_ready(apply_op_pallas(img, 'TranslateX', 0.0))
    assert np.array_equal(np.asarray(tr0), np.asarray(img))

    # Exercise every distinct lowering path (geometric resample, dense
    # photometric, per-image reduction, HSV, spatial rolls).
    for name, mag in (('Rotate', 20.0), ('Brightness', 1.3),
                      ('Contrast', 1.5), ('Hue', 0.03), ('Sharpness', 1.7)):
        y = jax.block_until_ready(apply_op_pallas(img, name, mag))
        assert y.shape == img.shape and y.dtype == jnp.uint8

    # Larger image so the geometric path uses larger lane-dense row tiles.
    img2 = jax.random.randint(k_img2, (1, 3, 64, 64), 0, 256,
                              dtype=jnp.int32).astype(jnp.uint8)
    rot2 = jax.block_until_ready(apply_op_pallas(img2, 'Rotate', 30.0))
    assert rot2.shape == (1, 3, 64, 64) and rot2.dtype == jnp.uint8

    print("KERNEL_OK")
</pallas_src>

<mosaic_0001>
module attributes {stable_mosaic.version = 11 : i64} {
  func.func @kernel(%arg0: i32, %arg1: memref<8xf32, #tpu.memory_space<smem>>, %arg2: memref<2x3x2x128xi8, #tpu.memory_space<vmem>>, %arg3: memref<2x3x2x128xi8, #tpu.memory_space<vmem>>) attributes {dimension_semantics = [#tpu.dimension_semantics<parallel>], iteration_bounds = array<i64: 1>, scalar_prefetch = 0 : i64, scratch_operands = 0 : i64, tpu.core_type = #tpu.core_type<tc>, window_params = [{transform_indices = @transform_0, window_bounds = array<i64: 8>}, {transform_indices = @transform_1, window_bounds = array<i64: 2, 3, 2, 128>}, {transform_indices = @transform_2, window_bounds = array<i64: 2, 3, 2, 128>}]} {
    %c6 = arith.constant 6 : index
    %0 = memref.load %arg1[%c6] : memref<8xf32, #tpu.memory_space<smem>>
    %c0 = arith.constant 0 : index
    %c0_0 = arith.constant 0 : index
    %c0_1 = arith.constant 0 : index
    %c0_2 = arith.constant 0 : index
    %1 = vector.load %arg2[%c0, %c0_0, %c0_1, %c0_2] : memref<2x3x2x128xi8, #tpu.memory_space<vmem>>, vector<2x3x2x128xi8>
    %2 = arith.extui %1 : vector<2x3x2x128xi8> to vector<2x3x2x128xi32>
    %3 = arith.sitofp %2 : vector<2x3x2x128xi32> to vector<2x3x2x128xf32>
    %cst = arith.constant 0.00392156886 : f32
    %4 = vector.broadcast %cst : f32 to vector<2x3x2x128xf32>
    %5 = arith.mulf %3, %4 : vector<2x3x2x128xf32>
    %cst_3 = arith.constant 0.000000e+00 : f32
    %6 = vector.broadcast %cst_3 : f32 to vector<2x3x2x128xf32>
    %7 = arith.cmpf ole, %5, %6 : vector<2x3x2x128xf32>
    %cst_4 = arith.constant 9.99999996E-13 : f32
    %8 = vector.broadcast %cst_4 : f32 to vector<2x3x2x128xf32>
    %9 = arith.maximumf %5, %8 : vector<2x3x2x128xf32>
    %10 = math.log %9 : vector<2x3x2x128xf32>
    %11 = vector.broadcast %0 : f32 to vector<2x3x2x128xf32>
    %12 = arith.mulf %11, %10 : vector<2x3x2x128xf32>
    %13 = math.exp %12 : vector<2x3x2x128xf32>
    %cst_5 = arith.constant 0.000000e+00 : f32
    %14 = vector.broadcast %cst_5 : f32 to vector<2x3x2x128xf32>
    %15 = arith.select %7, %14, %13 : vector<2x3x2x128xi1>, vector<2x3x2x128xf32>
    %cst_6 = arith.constant 2.550000e+02 : f32
    %16 = vector.broadcast %cst_6 : f32 to vector<2x3x2x128xf32>
    %17 = arith.mulf %16, %15 : vector<2x3x2x128xf32>
    %18 = math.roundeven %17 : vector<2x3x2x128xf32>
    %cst_7 = arith.constant 0.000000e+00 : f32
    %cst_8 = arith.constant 2.550000e+02 : f32
    %19 = vector.broadcast %cst_7 : f32 to vector<2x3x2x128xf32>
    %20 = arith.maximumf %19, %18 : vector<2x3x2x128xf32>
    %21 = vector.broadcast %cst_8 : f32 to vector<2x3x2x128xf32>
    %22 = arith.minimumf %21, %20 : vector<2x3x2x128xf32>
    %23 = arith.fptosi %22 : vector<2x3x2x128xf32> to vector<2x3x2x128xi32>
    %24 = arith.trunci %23 : vector<2x3x2x128xi32> to vector<2x3x2x128xi8>
    %c0_9 = arith.constant 0 : index
    %c0_10 = arith.constant 0 : index
    %c0_11 = arith.constant 0 : index
    %c0_12 = arith.constant 0 : index
    %25 = vector.load %arg3[%c0_9, %c0_10, %c0_11, %c0_12] : memref<2x3x2x128xi8, #tpu.memory_space<vmem>>, vector<2x3x2x128xi8>
    tpu.vector_store %arg3[%c0_9, %c0_10, %c0_11, %c0_12], %24 {strides = array<i32>} : memref<2x3x2x128xi8, #tpu.memory_space<vmem>>, vector<2x3x2x128xi8>,
    return
  }
  func.func @transform_0(%arg0: i32) -> i32 {
    %c0_i32 = arith.constant 0 : i32
    %c0_i32_0 = arith.constant 0 : i32
    return %c0_i32 : i32
  }
  func.func @transform_1(%arg0: i32) -> (i32, i32, i32, i32) {
    %c0_i32 = arith.constant 0 : i32
    %c0_i32_0 = arith.constant 0 : i32
    %c0_i32_1 = arith.constant 0 : i32
    %c0_i32_2 = arith.constant 0 : i32
    return %arg0, %c0_i32, %c0_i32_0, %c0_i32_1 : i32, i32, i32, i32
  }
  func.func @transform_2(%arg0: i32) -> (i32, i32, i32, i32) {
    %c0_i32 = arith.constant 0 : i32
    %c0_i32_0 = arith.constant 0 : i32
    %c0_i32_1 = arith.constant 0 : i32
    %c0_i32_2 = arith.constant 0 : i32
    return %arg0, %c0_i32, %c0_i32_0, %c0_i32_1 : i32, i32, i32, i32
  }
}

</mosaic_0001>

<llo_original>
// kernel: run.1
$region0: #{run.1}
  #allocation0 [shape = 'u32[]', space=smem, size = 0x4, offset = 0x4, fixed_abs, tag = 'smem constant byte address 0x4 - core index']
  #allocation1 [shape = 'u32[144,128]{1,0:T(1,128)}', space=vmem, size = 0x12000, scoped, tag = 'internal scratch']
  %s0 = inlined_call_operand.vmem [shape: f32[8], index: 0, kind: input, shape index: {}]
  %s1 = inlined_call_operand.vmem [shape: u8[2,3,2,128], index: 1, kind: input, shape index: {}]
  %s2 = inlined_call_operand.vmem [shape: u8[2,3,2,128], index: 2, kind: output, shape index: {}]
  %s3 = sld [smem:[#allocation0]]
  $region22: #{run.1} parent=0
    _
  %s5 = ssub.s32 1, %s3
  %s6 = scalar_select 0, %s5, %s3
  $region1: #{run.1} parent=0
    #allocation2 [shape = 'u8[512]{0}', space=smem, size = 0x200, scoped, tag = 'input window, operand 0, single buffered']
    #allocation3 [shape = 's32[1]{0}', space=sflag, size = 0x4, scoped, tag = 'scoped memory for run.1']
    %7 = vsyncpa [#allocation3], 0
    // Predicated region
    $region2: #{run.1} parent=1 // pred_check
      _
    $region3: #{run.1} parent=1 // pred_check_branch
      %9 = sbr.rel (0) target = $region5
    $region4: #{run.1} parent=1 // pred_region
      %s11 = ssub.s32 16, 16
      %12 = vsyncadd [#allocation3], %s11
      %s14 = sshll.u32 %s0, 4
      %s15 = int_to_ptr.vmem [resolvable:$true] %s14
      %17 = dma.vmem_to_smem %s15, 16, [#allocation2], [#allocation3]
    $region5: #{run.1} parent=1 // pred_fallthru
      _
    // Predicated region
    $region6: #{run.1} parent=1 // pred_check
      _
    $region7: #{run.1} parent=1 // pred_check_branch
      %19 = sbr.rel (0) target = $region9
    $region8: #{run.1} parent=1 // pred_region
      _
    $region9: #{run.1} parent=1 // pred_fallthru
      _
    // Predicated region
    $region10: #{run.1} parent=1 // pred_check
      _
    $region11: #{run.1} parent=1 // pred_check_branch
      %21 = sbr.rel (0) target = $region13
    $region12: #{run.1} parent=1 // pred_region
      %22 = dma.done [#allocation3], 16
    $region13: #{run.1} parent=1 // pred_fallthru
      _
    %23 = sfence
    %s24 = sld [smem:[#allocation2 + $0x6]]
    %v25 = vld [vmem:[%s1] sm:$0x1]
    %v26 = vld [vmem:[%s1 + $0x1] sm:$0x1]
    %v27 = vld [vmem:[%s1 + $0x2] sm:$0x1]
    %v28 = vld [vmem:[%s1 + $0x3] sm:$0x1]
    %v29 = vld [vmem:[%s1 + $0x4] sm:$0x1]
    %v30 = vld [vmem:[%s1 + $0x5] sm:$0x1]
    %v31 = vunpack.c.0.s8 %v25
    %v32 = vunpack.c.0.s8 %v26
    %v33 = vunpack.c.0.s8 %v27
    %v34 = vunpack.c.0.s8 %v28
    %v35 = vunpack.c.0.s8 %v29
    %v36 = vunpack.c.0.s8 %v30
    %v37 = vand.u32 %v31, 255
    %v38 = vand.u32 %v32, 255
    %v39 = vand.u32 %v33, 255
    %v40 = vand.u32 %v34, 255
    %v41 = vand.u32 %v35, 255
    %v42 = vand.u32 %v36, 255
    %v43 = vcvt.s32.f32 %v37
    %v44 = vcvt.s32.f32 %v38
    %v45 = vcvt.s32.f32 %v39
    %v46 = vcvt.s32.f32 %v40
    %v47 = vcvt.s32.f32 %v41
    %v48 = vcvt.s32.f32 %v42
    %v49 = vmul.f32 %v43, 0.003921569
    %v50 = vmul.f32 %v44, 0.003921569
    %v51 = vmul.f32 %v45, 0.003921569
    %v52 = vmul.f32 %v46, 0.003921569
    %v53 = vmul.f32 %v47, 0.003921569
    %v54 = vmul.f32 %v48, 0.003921569
    %vm55 = vcmp.le.f32.partialorder %v49, 0.0
    %vm56 = vcmp.le.f32.partialorder %v50, 0.0
    %vm57 = vcmp.le.f32.partialorder %v51, 0.0
    %vm58 = vcmp.le.f32.partialorder %v52, 0.0
    %vm59 = vcmp.le.f32.partialorder %v53, 0.0
    %vm60 = vcmp.le.f32.partialorder %v54, 0.0
    %v61 = vmax.f32 %v49, 1e-12
    %v62 = vmax.f32 %v50, 1e-12
    %v63 = vmax.f32 %v51, 1e-12
    %v64 = vmax.f32 %v52, 1e-12
    %v65 = vmax.f32 %v53, 1e-12
    %v66 = vmax.f32 %v54, 1e-12
    %v67 = vlog2.pop %v61
    %v68 = vmul.f32 %v67, 0.6931472
    %v69 = vlog2.pop %v62
    %v70 = vmul.f32 %v69, 0.6931472
    %v71 = vlog2.pop %v63
    %v72 = vmul.f32 %v71, 0.6931472
    %v73 = vlog2.pop %v64
    %v74 = vmul.f32 %v73, 0.6931472
    %v75 = vlog2.pop %v65
    %v76 = vmul.f32 %v75, 0.6931472
    %v77 = vlog2.pop %v66
    %v78 = vmul.f32 %v77, 0.6931472
    %v79 = vstv %s24
    %v80 = vmul.f32 %v79, %v68
    %v81 = vmul.f32 %v79, %v70
    %v82 = vmul.f32 %v79, %v72
    %v83 = vmul.f32 %v79, %v74
    %v84 = vmul.f32 %v79, %v76
    %v85 = vmul.f32 %v79, %v78
    %v86 = vmul.f32 %v80, 1.442695
    %v87 = vpow.pop %v86
    %v88 = vmul.f32 %v81, 1.442695
    %v89 = vpow.pop %v88
    %v90 = vmul.f32 %v82, 1.442695
    %v91 = vpow.pop %v90
    %v92 = vmul.f32 %v83, 1.442695
    %v93 = vpow.pop %v92
    %v94 = vmul.f32 %v84, 1.442695
    %v95 = vpow.pop %v94
    %v96 = vmul.f32 %v85, 1.442695
    %v97 = vpow.pop %v96
    %v98 = vsel %vm55, 0.0, %v87
    %v99 = vsel %vm56, 0.0, %v89
    %v100 = vsel %vm57, 0.0, %v91
    %v101 = vsel %vm58, 0.0, %v93
    %v102 = vsel %vm59, 0.0, %v95
    %v103 = vsel %vm60, 0.0, %v97
    %v104 = vmul.f32 %v98, 255.0
    %v105 = vmul.f32 %v99, 255.0
    %v106 = vmul.f32 %v100, 255.0
    %v107 = vmul.f32 %v101, 255.0
    %v108 = vmul.f32 %v102, 255.0
    %v109 = vmul.f32 %v103, 255.0
    %v110 = vround.ne.pseudo %v104
    %v111 = vround.ne.pseudo %v105
    %v112 = vround.ne.pseudo %v106
    %v113 = vround.ne.pseudo %v107
    %v114 = vround.ne.pseudo %v108
    %v115 = vround.ne.pseudo %v109
    %v116 = vmax.f32 %v110, 0.0
    %v117 = vmax.f32 %v111, 0.0
    %v118 = vmax.f32 %v112, 0.0
    %v119 = vmax.f32 %v113, 0.0
    %v120 = vmax.f32 %v114, 0.0
    %v121 = vmax.f32 %v115, 0.0
    %v122 = vmin.f32 %v116, 255.0
    %v123 = vmin.f32 %v117, 255.0
    %v124 = vmin.f32 %v118, 255.0
    %v125 = vmin.f32 %v119, 255.0
    %v126 = vmin.f32 %v120, 255.0
    %v127 = vmin.f32 %v121, 255.0
    %v128 = vcvt.f32.s32.to.zero.pseudo %v122
    %v129 = vcvt.f32.s32.to.zero.pseudo %v123
    %v130 = vcvt.f32.s32.to.zero.pseudo %v124
    %v131 = vcvt.f32.s32.to.zero.pseudo %v125
    %v132 = vcvt.f32.s32.to.zero.pseudo %v126
    %v133 = vcvt.f32.s32.to.zero.pseudo %v127
    %v134 = vpack.c.b16 %v128, %v128
    %v135 = vpack.c.b8 %v134, %v134
    %v136 = vpack.c.b16 %v129, %v129
    %v137 = vpack.c.b8 %v136, %v136
    %v138 = vpack.c.b16 %v130, %v130
    %v139 = vpack.c.b8 %v138, %v138
    %v140 = vpack.c.b16 %v131, %v131
    %v141 = vpack.c.b8 %v140, %v140
    %v142 = vpack.c.b16 %v132, %v132
    %v143 = vpack.c.b8 %v142, %v142
    %v144 = vpack.c.b16 %v133, %v133
    %v145 = vpack.c.b8 %v144, %v144
    %vm146 = vcmask 1040384
    %vm147 = vsmask.f32 256
    %vm148 = vmand %vm146, %vm147
    %v149 = vld [vmem:[%s2] sm:$0x1]
    %v150 = vsel %vm148, %v135, %v149
    %151 = vst [vmem:[%s2] sm:$0x1] %v150
    %v152 = vld [vmem:[%s2 + $0x1] sm:$0x1]
    %v153 = vsel %vm148, %v137, %v152
    %154 = vst [vmem:[%s2 + $0x1] sm:$0x1] %v153
    %v155 = vld [vmem:[%s2 + $0x2] sm:$0x1]
    %v156 = vsel %vm148, %v139, %v155
    %157 = vst [vmem:[%s2 + $0x2] sm:$0x1] %v156
    %v158 = vld [vmem:[%s2 + $0x3] sm:$0x1]
    %v159 = vsel %vm148, %v141, %v158
    %160 = vst [vmem:[%s2 + $0x3] sm:$0x1] %v159
    %v161 = vld [vmem:[%s2 + $0x4] sm:$0x1]
    %v162 = vsel %vm148, %v143, %v161
    %163 = vst [vmem:[%s2 + $0x4] sm:$0x1] %v162
    %v164 = vld [vmem:[%s2 + $0x5] sm:$0x1]
    %v165 = vsel %vm148, %v145, %v164
    %166 = vst [vmem:[%s2 + $0x5] sm:$0x1] %v165
    // Predicated region
    $region14: #{run.1} parent=1 // pred_check
      _
    $region15: #{run.1} parent=1 // pred_check_branch
      %168 = sbr.rel (0) target = $region17
    $region16: #{run.1} parent=1 // pred_region
      _
    $region17: #{run.1} parent=1 // pred_fallthru
      _
    // Predicated region
    $region18: #{run.1} parent=1 // pred_check
      _
    $region19: #{run.1} parent=1 // pred_check_branch
      %170 = sbr.rel (0) target = $region21
    $region20: #{run.1} parent=1 // pred_region
      _
    $region21: #{run.1} parent=1 // pred_fallthru
      _
    %171 = vsyncpa [#allocation3], 1

</llo_original>
